<compile_context>
chip_gen: v5e
topology: v5e:2x2
jax: 0.10.0
libtpu: 0.0.40
codegen_flags: <defaults>
</compile_context>

<pallas_src>
import functools

import jax
import jax.numpy as jnp
from jax.experimental import pallas as pl
from jax.experimental.pallas import tpu as pltpu


_CHUNK = 512        # inner pixel-chunk width (keeps per-chunk vregs ~<40)
_MAX_CHUNKS = 64    # cap on static unroll -> pixel tile capped at 32768 px


def _round_up(x, m):
    return ((x + m - 1) // m) * m


# ----------------------------------------------------------------------------
# Fused Pallas kernel: backbone stand-in + all heads, channel-major
# ----------------------------------------------------------------------------
def _hnet_fused_kernel(*refs, num_inputs, in_channels, chunks):
    # Ref layout:
    #   refs[0:ni]   x_k       (Ck, tp)        f32 pixel tiles (channel-major)
    #   refs[ni+0]   wbb       (F, sum_c)      bf16 backbone weight (packed)
    #   refs[ni+1]   bbb       (F, 1)          f32 backbone bias
    #   refs[ni+2]   whd       (sum_d, F)      bf16 head weights (packed)
    #   refs[ni+3]   bhd       (sum_d, 1)      f32 head biases (packed)
    #   refs[ni+4]   msk       (sum_d, 1)      f32, 1.0 on rows of 'hm' heads
    #   refs[ni+5]   out       (sum_d, tp)     f32 fused head output
    #   refs[ni+6]   xstage    (sum_c, chunk)  f32 VMEM staging scratch
    ni = num_inputs
    xs = refs[:ni]
    wbb_ref, bbb_ref, whd_ref, bhd_ref, msk_ref = refs[ni:ni + 5]
    out_ref = refs[ni + 5]
    xstage_ref = refs[ni + 6]

    # Hoisted, loop-invariant parameter loads (a handful of vregs).
    w_bb = wbb_ref[...]          # (F, sum_c)  bf16
    b_bb = bbb_ref[...]          # (F, 1)      f32
    w_hd = whd_ref[...]          # (sum_d, F)  bf16
    b_hd = bhd_ref[...]          # (sum_d, 1)  f32
    m_sig = msk_ref[...]         # (sum_d, 1)  f32

    # Statically-unrolled pixel-chunk loop: every slice offset/size is a
    # Python int (lane-aligned where possible), keeping lowering trivial and
    # per-chunk intermediates comfortably inside the vreg file.
    for off, sz in chunks:
        # Stage the per-stream channel slices into one (sum_c, sz) tile so the
        # backbone "concat + 1x1 conv" is a SINGLE K=sum_c MXU matmul.
        c_off = 0
        for x_ref, c in zip(xs, in_channels):
            xstage_ref[pl.ds(c_off, c), pl.ds(0, sz)] = x_ref[:, pl.ds(off, sz)]
            c_off += c
        xc = xstage_ref[:, pl.ds(0, sz)].astype(jnp.bfloat16)      # (sum_c, sz)

        # Backbone stand-in: fused concat + 1x1 conv + ReLU, f32 accumulate.
        feat = jnp.dot(w_bb, xc, preferred_element_type=jnp.float32) + b_bb
        feat = jnp.maximum(feat, 0.0).astype(jnp.bfloat16)          # (F, sz)

        # All heads fused into one matmul; sigmoid only on the 'hm' rows.
        y = jnp.dot(w_hd, feat, preferred_element_type=jnp.float32) + b_hd
        y = y + m_sig * (jax.nn.sigmoid(y) - y)                     # (sum_d, sz)
        out_ref[:, pl.ds(off, sz)] = y.astype(out_ref.dtype)        # one wide store


# ----------------------------------------------------------------------------
# HNet in JAX / Pallas
# ----------------------------------------------------------------------------
class HNetPallas:
    def __init__(self, num_classes, image_channels, features, head_dims, key):
        self.heads = dict(head_dims)
        self.features = features
        self.in_channels = tuple([num_classes, *image_channels])
        sum_c = sum(self.in_channels)

        head_names = list(self.heads.keys())
        keys = jax.random.split(key, 2 + 2 * len(head_names))

        # Backbone stand-in params, already packed channel-major: (F, sum_c).
        w_bb = jax.random.normal(keys[0], (features, sum_c), jnp.float32) * 0.1
        self.bb_w = w_bb.astype(jnp.bfloat16)
        self.bb_b = jax.random.normal(keys[1], (features, 1), jnp.float32) * 0.01

        # Head params packed into one (sum_d, F) matrix + (sum_d, 1) bias.
        # PyTorch Conv2d(features, dim, 1) weight is (dim, features, 1, 1) ->
        # exactly the (dim, features) rows we stack here.
        ws, bs, mrows = [], [], []
        self.head_offsets = {}
        off = 0
        for idx, (name, dim) in enumerate(self.heads.items()):
            wk, bk = keys[2 + 2 * idx], keys[3 + 2 * idx]
            ws.append(jax.random.normal(wk, (dim, features), jnp.float32) * 0.1)
            bs.append(jax.random.normal(bk, (dim, 1), jnp.float32) * 0.01)
            # NOTE: substring match mirrors the PyTorch module ('hm' in head).
            mrows.append(jnp.full((dim, 1), 1.0 if "hm" in name else 0.0,
                                  jnp.float32))
            self.head_offsets[name] = (off, dim)
            off += dim
        self.sum_d = off
        self.head_w = jnp.concatenate(ws, axis=0).astype(jnp.bfloat16)
        self.head_b = jnp.concatenate(bs, axis=0)
        self.sigmoid_mask = jnp.concatenate(mrows, axis=0)

    def __call__(self, sample):
        xs_nchw = [sample["pre_hm"], sample["pre_img"], sample["img"]]
        n = xs_nchw[0].shape[0]
        h, w = xs_nchw[0].shape[2], xs_nchw[0].shape[3]
        hw = h * w
        sum_c = sum(self.in_channels)
        sum_d = self.sum_d
        feats = self.features

        # Free reshape: NCHW -> (N, C, H*W); no transpose, no concat in HBM.
        xs = [x.reshape(x.shape[0], x.shape[1], hw) for x in xs_nchw]

        # ----- per-generation VMEM limit (v7x: 64 MiB physical vs 128 MiB) ---
        try:
            vmem_cap = int(getattr(pltpu.get_tpu_info(),
                                   "vmem_capacity_bytes", 64 << 20))
        except Exception:  # pragma: no cover - conservative fallback
            vmem_cap = 64 << 20
        vmem_limit = max(32 << 20, min(3 * vmem_cap // 4, 96 << 20))

        # ----- pixel-tile selection ------------------------------------------
        # Per-step resident data ~ 2*(sum_c+sum_d)*4 B/px double-buffered
        # (~5 MiB at tp=32768) -> fits every generation; tp is capped by the
        # static chunk-unroll budget, not by VMEM.
        tp_hard = _CHUNK * _MAX_CHUNKS            # 32768 px
        if hw <= tp_hard:
            tp = hw
            # Keep >=2 pixel blocks when batch==1 so both v7x TCs have work.
            if n == 1 and hw >= 2 * 128:
                tp = _round_up(-(-hw // 2), 128)
        else:
            tp = tp_hard                          # multiple of 128, tail masked
        grid = (n, pl.cdiv(hw, tp))

        # Inner chunk plan (static): full 512-px chunks + one remainder chunk.
        chunks = tuple((o, min(_CHUNK, tp - o)) for o in range(0, tp, _CHUNK))
        chunk_w = min(_CHUNK, tp)

        # ----- pallas_call wiring ---------------------------------------------
        in_specs = []
        args = []
        for x in xs:
            c = x.shape[1]
            in_specs.append(pl.BlockSpec((None, c, tp), lambda i, j: (i, 0, j)))
            args.append(x)
        for p in (self.bb_w, self.bb_b, self.head_w, self.head_b,
                  self.sigmoid_mask):
            in_specs.append(pl.BlockSpec(p.shape, lambda i, j: (0, 0)))
            args.append(p)

        out_shape = jax.ShapeDtypeStruct((n, sum_d, hw), jnp.float32)
        out_specs = pl.BlockSpec((None, sum_d, tp), lambda i, j: (i, 0, j))

        kernel = functools.partial(
            _hnet_fused_kernel,
            num_inputs=len(xs),
            in_channels=tuple(x.shape[1] for x in xs),
            chunks=chunks,
        )

        flops = 2 * n * hw * (sum_c * feats + feats * sum_d)
        transcendentals = n * hw * sum_d  # sigmoid evaluated on all packed rows
        bytes_accessed = (4 * n * hw * (sum_c + sum_d)
                          + 2 * (self.bb_w.size + self.head_w.size)
                          + 4 * (self.bb_b.size + self.head_b.size
                                 + self.sigmoid_mask.size))

        fused = pl.pallas_call(
            kernel,
            out_shape=out_shape,
            grid=grid,
            in_specs=in_specs,
            out_specs=out_specs,
            scratch_shapes=[pltpu.VMEM((sum_c, chunk_w), jnp.float32)],
            compiler_params=pltpu.CompilerParams(
                dimension_semantics=("parallel", "parallel"),
                vmem_limit_bytes=int(vmem_limit),
            ),
            cost_estimate=pl.CostEstimate(
                flops=int(flops),
                transcendentals=int(transcendentals),
                bytes_accessed=int(bytes_accessed),
            ),
        )(*args)

        # Split the fused (N, sum_d, H*W) result into the per-head dict.
        out = {}
        for name, (off, dim) in self.head_offsets.items():
            out[name] = fused[:, off:off + dim, :].reshape(n, dim, h, w)
        return out


# ----------------------------------------------------------------------------
# Pure-JAX reference (mirrors the kernel's bf16 matmul / f32 accumulate math)
# ----------------------------------------------------------------------------
def _reference_forward(model, sample):
    xs_nchw = [sample["pre_hm"], sample["pre_img"], sample["img"]]
    n = xs_nchw[0].shape[0]
    h, w = xs_nchw[0].shape[2], xs_nchw[0].shape[3]
    x = jnp.concatenate(
        [xx.reshape(xx.shape[0], xx.shape[1], h * w) for xx in xs_nchw], axis=1)

    feat = jnp.einsum("fc,ncp->nfp", model.bb_w, x.astype(jnp.bfloat16),
                      preferred_element_type=jnp.float32) + model.bb_b[None]
    feat = jnp.maximum(feat, 0.0).astype(jnp.bfloat16)

    y = jnp.einsum("df,nfp->ndp", model.head_w, feat,
                   preferred_element_type=jnp.float32) + model.head_b[None]

    out = {}
    for name, (off, dim) in model.head_offsets.items():
        yi = y[:, off:off + dim, :]
        if "hm" in name:
            yi = jax.nn.sigmoid(yi)
        out[name] = yi.reshape(n, dim, h, w)
    return out


if __name__ == "__main__":
    key = jax.random.PRNGKey(0)
    k_model, k1, k2, k3, k4, k5, k6 = jax.random.split(key, 7)

    # Small synthetic setup consistent with the module.
    num_classes = 4          # pre_hm channels
    image_channels = [3, 3]  # pre_img, img channels
    features = 32
    head_dims = {"hm": num_classes, "wh": 2, "reg": 2, "tracking": 2}

    model = HNetPallas(num_classes, image_channels, features, head_dims, k_model)

    def make_sample(kh, kp, ki, n, h, w):
        return {
            "pre_hm": jax.random.uniform(kh, (n, num_classes, h, w), jnp.float32),
            "pre_img": jax.random.normal(kp, (n, image_channels[0], h, w), jnp.float32),
            "img": jax.random.normal(ki, (n, image_channels[1], h, w), jnp.float32),
        }

    # Case 1: batch=2, 16x16 -> single-chunk, single-block-per-sample path.
    s1 = make_sample(k1, k2, k3, 2, 16, 16)
    out1 = jax.tree_util.tree_map(jax.block_until_ready, model(s1))
    ref1 = _reference_forward(model, s1)
    for name, dim in head_dims.items():
        assert out1[name].shape == (2, dim, 16, 16), name
        assert jnp.allclose(out1[name], ref1[name], atol=2e-3, rtol=2e-3), name

    # Case 2: batch=1, 64x64 -> exercises the >=2-block megacore split and the
    # multi-chunk (statically unrolled) path inside the kernel.
    s2 = make_sample(k4, k5, k6, 1, 64, 64)
    out2 = jax.tree_util.tree_map(jax.block_until_ready, model(s2))
    ref2 = _reference_forward(model, s2)
    for name, dim in head_dims.items():
        assert out2[name].shape == (1, dim, 64, 64), name
        assert jnp.allclose(out2[name], ref2[name], atol=2e-3, rtol=2e-3), name

    print("KERNEL_OK")
</pallas_src>

<mosaic_0001>
module attributes {stable_mosaic.version = 11 : i64} {
  func.func @_hnet_fused_kernel(%arg0: i32, %arg1: i32, %arg2: memref<1x4x256xf32, #tpu.memory_space<vmem>>, %arg3: memref<1x3x256xf32, #tpu.memory_space<vmem>>, %arg4: memref<1x3x256xf32, #tpu.memory_space<vmem>>, %arg5: memref<32x10xbf16, #tpu.memory_space<vmem>>, %arg6: memref<32x1xf32, #tpu.memory_space<vmem>>, %arg7: memref<10x32xbf16, #tpu.memory_space<vmem>>, %arg8: memref<10x1xf32, #tpu.memory_space<vmem>>, %arg9: memref<10x1xf32, #tpu.memory_space<vmem>>, %arg10: memref<1x10x256xf32, #tpu.memory_space<vmem>>, %arg11: memref<10x256xf32, #tpu.memory_space<vmem>>) attributes {dimension_semantics = [#tpu.dimension_semantics<parallel>, #tpu.dimension_semantics<parallel>], iteration_bounds = array<i64: 2, 1>, scalar_prefetch = 0 : i64, scratch_operands = 1 : i64, tpu.core_type = #tpu.core_type<tc>, window_params = [{transform_indices = @transform_0, window_bounds = array<i64: 1, 4, 256>}, {transform_indices = @transform_1, window_bounds = array<i64: 1, 3, 256>}, {transform_indices = @transform_2, window_bounds = array<i64: 1, 3, 256>}, {pipeline_mode = #tpu.pipeline_mode<synchronous>, transform_indices = @transform_3, window_bounds = array<i64: 32, 10>}, {pipeline_mode = #tpu.pipeline_mode<synchronous>, transform_indices = @transform_4, window_bounds = array<i64: 32, 1>}, {pipeline_mode = #tpu.pipeline_mode<synchronous>, transform_indices = @transform_5, window_bounds = array<i64: 10, 32>}, {pipeline_mode = #tpu.pipeline_mode<synchronous>, transform_indices = @transform_6, window_bounds = array<i64: 10, 1>}, {pipeline_mode = #tpu.pipeline_mode<synchronous>, transform_indices = @transform_7, window_bounds = array<i64: 10, 1>}, {transform_indices = @transform_8, window_bounds = array<i64: 1, 10, 256>}]} {
    %c0 = arith.constant 0 : index
    %c0_0 = arith.constant 0 : index
    %0 = vector.load %arg5[%c0, %c0_0] : memref<32x10xbf16, #tpu.memory_space<vmem>>, vector<32x10xbf16>
    %c0_1 = arith.constant 0 : index
    %c0_2 = arith.constant 0 : index
    %1 = vector.load %arg6[%c0_1, %c0_2] : memref<32x1xf32, #tpu.memory_space<vmem>>, vector<32x1xf32>
    %c0_3 = arith.constant 0 : index
    %c0_4 = arith.constant 0 : index
    %2 = vector.load %arg7[%c0_3, %c0_4] : memref<10x32xbf16, #tpu.memory_space<vmem>>, vector<10x32xbf16>
    %c0_5 = arith.constant 0 : index
    %c0_6 = arith.constant 0 : index
    %3 = vector.load %arg8[%c0_5, %c0_6] : memref<10x1xf32, #tpu.memory_space<vmem>>, vector<10x1xf32>
    %c0_7 = arith.constant 0 : index
    %c0_8 = arith.constant 0 : index
    %4 = vector.load %arg9[%c0_7, %c0_8] : memref<10x1xf32, #tpu.memory_space<vmem>>, vector<10x1xf32>
    %c0_9 = arith.constant 0 : index
    %c0_10 = arith.constant 0 : index
    %c0_11 = arith.constant 0 : index
    %5 = vector.load %arg2[%c0_9, %c0_10, %c0_11] : memref<1x4x256xf32, #tpu.memory_space<vmem>>, vector<1x4x256xf32>
    %6 = vector.shape_cast %5 : vector<1x4x256xf32> to vector<4x256xf32>
    %c0_12 = arith.constant 0 : index
    %c0_13 = arith.constant 0 : index
    %7 = vector.load %arg11[%c0_12, %c0_13] : memref<10x256xf32, #tpu.memory_space<vmem>>, vector<4x256xf32>
    tpu.vector_store %arg11[%c0_12, %c0_13], %6 {strides = array<i32>} : memref<10x256xf32, #tpu.memory_space<vmem>>, vector<4x256xf32>,
    %c0_14 = arith.constant 0 : index
    %c0_15 = arith.constant 0 : index
    %c0_16 = arith.constant 0 : index
    %8 = vector.load %arg3[%c0_14, %c0_15, %c0_16] : memref<1x3x256xf32, #tpu.memory_space<vmem>>, vector<1x3x256xf32>
    %9 = vector.shape_cast %8 : vector<1x3x256xf32> to vector<3x256xf32>
    %c4 = arith.constant 4 : index
    %c0_17 = arith.constant 0 : index
    %10 = vector.load %arg11[%c4, %c0_17] : memref<10x256xf32, #tpu.memory_space<vmem>>, vector<3x256xf32>
    tpu.vector_store %arg11[%c4, %c0_17], %9 {strides = array<i32>} : memref<10x256xf32, #tpu.memory_space<vmem>>, vector<3x256xf32>,
    %c0_18 = arith.constant 0 : index
    %c0_19 = arith.constant 0 : index
    %c0_20 = arith.constant 0 : index
    %11 = vector.load %arg4[%c0_18, %c0_19, %c0_20] : memref<1x3x256xf32, #tpu.memory_space<vmem>>, vector<1x3x256xf32>
    %12 = vector.shape_cast %11 : vector<1x3x256xf32> to vector<3x256xf32>
    %c7 = arith.constant 7 : index
    %c0_21 = arith.constant 0 : index
    %13 = vector.load %arg11[%c7, %c0_21] : memref<10x256xf32, #tpu.memory_space<vmem>>, vector<3x256xf32>
    tpu.vector_store %arg11[%c7, %c0_21], %12 {strides = array<i32>} : memref<10x256xf32, #tpu.memory_space<vmem>>, vector<3x256xf32>,
    %c0_22 = arith.constant 0 : index
    %c0_23 = arith.constant 0 : index
    %14 = vector.load %arg11[%c0_22, %c0_23] : memref<10x256xf32, #tpu.memory_space<vmem>>, vector<10x256xf32>
    %15 = arith.truncf %14 : vector<10x256xf32> to vector<10x256xbf16>
    %cst = arith.constant dense<0.000000e+00> : vector<32x256xf32>
    %16 = tpu.matmul %0, %15, %cst {dimension_numbers = #tpu.dot_dimension_numbers<[1], [0], [0], [1], [0, 0, 1, 1], [], []>} : vector<32x10xbf16>, vector<10x256xbf16>, vector<32x256xf32> -> vector<32x256xf32>
    %17 = vector.broadcast %1 : vector<32x1xf32> to vector<32x256xf32>
    %18 = arith.addf %16, %17 : vector<32x256xf32>
    %cst_24 = arith.constant 0.000000e+00 : f32
    %19 = vector.broadcast %cst_24 : f32 to vector<32x256xf32>
    %20 = arith.maximumf %18, %19 : vector<32x256xf32>
    %21 = arith.truncf %20 : vector<32x256xf32> to vector<32x256xbf16>
    %cst_25 = arith.constant dense<0.000000e+00> : vector<10x256xf32>
    %22 = tpu.matmul %2, %21, %cst_25 {dimension_numbers = #tpu.dot_dimension_numbers<[1], [0], [0], [1], [0, 0, 1, 1], [], []>} : vector<10x32xbf16>, vector<32x256xbf16>, vector<10x256xf32> -> vector<10x256xf32>
    %23 = vector.broadcast %3 : vector<10x1xf32> to vector<10x256xf32>
    %24 = arith.addf %22, %23 : vector<10x256xf32>
    %25 = arith.negf %24 : vector<10x256xf32>
    %26 = math.exp %25 : vector<10x256xf32>
    %cst_26 = arith.constant 1.000000e+00 : f32
    %27 = vector.broadcast %cst_26 : f32 to vector<10x256xf32>
    %28 = arith.addf %27, %26 : vector<10x256xf32>
    %29 = arith.divf %27, %28 : vector<10x256xf32>
    %30 = arith.subf %29, %24 : vector<10x256xf32>
    %31 = vector.broadcast %4 : vector<10x1xf32> to vector<10x256xf32>
    %32 = arith.mulf %31, %30 : vector<10x256xf32>
    %33 = arith.addf %24, %32 : vector<10x256xf32>
    %c0_27 = arith.constant 0 : index
    %c0_28 = arith.constant 0 : index
    %c0_29 = arith.constant 0 : index
    %34 = vector.load %arg10[%c0_27, %c0_28, %c0_29] : memref<1x10x256xf32, #tpu.memory_space<vmem>>, vector<1x10x256xf32>
    %35 = vector.shape_cast %34 : vector<1x10x256xf32> to vector<10x256xf32>
    %36 = vector.shape_cast %33 : vector<10x256xf32> to vector<1x10x256xf32>
    tpu.vector_store %arg10[%c0_27, %c0_28, %c0_29], %36 {strides = array<i32>} : memref<1x10x256xf32, #tpu.memory_space<vmem>>, vector<1x10x256xf32>,
    return
  }
  func.func @transform_0(%arg0: i32, %arg1: i32) -> (i32, i32, i32) {
    %c0_i32 = arith.constant 0 : i32
    %c0_i32_0 = arith.constant 0 : i32
    return %arg0, %c0_i32, %arg1 : i32, i32, i32
  }
  func.func @transform_1(%arg0: i32, %arg1: i32) -> (i32, i32, i32) {
    %c0_i32 = arith.constant 0 : i32
    %c0_i32_0 = arith.constant 0 : i32
    return %arg0, %c0_i32, %arg1 : i32, i32, i32
  }
  func.func @transform_2(%arg0: i32, %arg1: i32) -> (i32, i32, i32) {
    %c0_i32 = arith.constant 0 : i32
    %c0_i32_0 = arith.constant 0 : i32
    return %arg0, %c0_i32, %arg1 : i32, i32, i32
  }
  func.func @transform_3(%arg0: i32, %arg1: i32) -> (i32, i32) {
    %c0_i32 = arith.constant 0 : i32
    %c0_i32_0 = arith.constant 0 : i32
    %c0_i32_1 = arith.constant 0 : i32
    return %c0_i32, %c0_i32_0 : i32, i32
  }
  func.func @transform_4(%arg0: i32, %arg1: i32) -> (i32, i32) {
    %c0_i32 = arith.constant 0 : i32
    %c0_i32_0 = arith.constant 0 : i32
    %c0_i32_1 = arith.constant 0 : i32
    return %c0_i32, %c0_i32_0 : i32, i32
  }
  func.func @transform_5(%arg0: i32, %arg1: i32) -> (i32, i32) {
    %c0_i32 = arith.constant 0 : i32
    %c0_i32_0 = arith.constant 0 : i32
    %c0_i32_1 = arith.constant 0 : i32
    return %c0_i32, %c0_i32_0 : i32, i32
  }
  func.func @transform_6(%arg0: i32, %arg1: i32) -> (i32, i32) {
    %c0_i32 = arith.constant 0 : i32
    %c0_i32_0 = arith.constant 0 : i32
    %c0_i32_1 = arith.constant 0 : i32
    return %c0_i32, %c0_i32_0 : i32, i32
  }
  func.func @transform_7(%arg0: i32, %arg1: i32) -> (i32, i32) {
    %c0_i32 = arith.constant 0 : i32
    %c0_i32_0 = arith.constant 0 : i32
    %c0_i32_1 = arith.constant 0 : i32
    return %c0_i32, %c0_i32_0 : i32, i32
  }
  func.func @transform_8(%arg0: i32, %arg1: i32) -> (i32, i32, i32) {
    %c0_i32 = arith.constant 0 : i32
    %c0_i32_0 = arith.constant 0 : i32
    return %arg0, %c0_i32, %arg1 : i32, i32, i32
  }
}

</mosaic_0001>

<llo_original>
// kernel: tpu_custom_call.1
$region0: #{tpu_custom_call.1}
  #allocation0 [shape = 'u32[]', space=smem, size = 0x4, offset = 0x4, fixed_abs, tag = 'smem constant byte address 0x4 - core index']
  #allocation1 [shape = 'u32[72,128]{1,0:T(1,128)}', space=vmem, size = 0x9000, scoped, tag = 'internal scratch']
  #allocation2 [shape = 'f32[10,256]{1,0:T(8,128)}', space=vmem, size = 0x4000, scoped, tag = 'scratch operand']
  %s0 = inlined_call_operand.vmem [shape: f32[2,4,256], index: 0, kind: input, shape index: {}]
  %s1 = inlined_call_operand.vmem [shape: f32[2,3,256], index: 1, kind: input, shape index: {}]
  %s2 = inlined_call_operand.vmem [shape: f32[2,3,256], index: 2, kind: input, shape index: {}]
  %s3 = inlined_call_operand.vmem [shape: bf16[32,10], index: 3, kind: input, shape index: {}]
  %s4 = inlined_call_operand.vmem [shape: f32[32,1], index: 4, kind: input, shape index: {}]
  %s5 = inlined_call_operand.vmem [shape: bf16[10,32], index: 5, kind: input, shape index: {}]
  %s6 = inlined_call_operand.vmem [shape: f32[10,1], index: 6, kind: input, shape index: {}]
  %s7 = inlined_call_operand.vmem [shape: f32[10,1], index: 7, kind: input, shape index: {}]
  %s8 = inlined_call_operand.vmem [shape: f32[2,10,256], index: 8, kind: output, shape index: {}]
  %s9 = sld [smem:[#allocation0]]
  $region65: #{tpu_custom_call.1} parent=0
    _
  %s11 = ssub.s32 1, %s9
  %s12 = scalar_select 0, %s11, %s9
  loop: start=0, step=1, limit=4
  $region2: #{tpu_custom_call.1} parent=0 // loop_pre_header
    _
  $region3: #{tpu_custom_call.1} parent=0 // loop_header
    %s14 = sphi 0, %s18
    %p15 = scmp.ge.s32.totalorder %s14, 4
    %s21 = sphi 0, %s33
    %s22 = sphi 0, %s29
    %s23 = sphi 0, %s21
    %s24 = sphi 0, %s22
    %s25 = sphi 0, %s23
    %s26 = sphi 0, %s24
    %s38 = sphi 0, %s40
    %s41 = sphi 0, %s38
    %s42 = sphi 0, %s41
    %s58 = sphi 0, %s42
    %s66 = sphi 0, %s68
    %s69 = sphi 0, %s66
    %s70 = sphi 0, %s69
    %s86 = sphi 0, %s70
    %s94 = sphi 0, %s96
    %s97 = sphi 0, %s94
    %s98 = sphi 0, %s97
    %s114 = sphi 0, %s98
    %s118 = sphi 0, %s118
    %s120 = sphi 0, %s118
    %s121 = sphi 0, %s120
    %s135 = sphi 0, %s121
    %s139 = sphi 0, %s139
    %s141 = sphi 0, %s139
    %s142 = sphi 0, %s141
    %s156 = sphi 0, %s142
    %s160 = sphi 0, %s160
    %s162 = sphi 0, %s160
    %s163 = sphi 0, %s162
    %s177 = sphi 0, %s163
    %s181 = sphi 0, %s181
    %s183 = sphi 0, %s181
    %s184 = sphi 0, %s183
    %s198 = sphi 0, %s184
    %s202 = sphi 0, %s202
    %s204 = sphi 0, %s202
    %s205 = sphi 0, %s204
    %s219 = sphi 0, %s205
    %s227 = sphi 0, %s229
    %s230 = sphi 0, %s227
    %s231 = sphi 0, %s230
    %s247 = sphi 0, %s231
  $region4: #{tpu_custom_call.1} parent=0 // loop_header_branch
    %17 = sbr.rel (%p15) target = $region8
  $region5: #{tpu_custom_call.1} parent=0 // loop_body
    %s19 = ssub.s32 %s14, 1
    %s20 = ssub.s32 %s14, 2
    %s27 = sadd.s32 1, %s22
    %p28 = scmp.ge.s32.totalorder %s27, 1
    %s29 = scalar_select %p28, 0, %s27
    %s30 = sadd.s32 1, %s21
    %s31 = scalar_select %p28, %s30, %s21
    %p32 = scmp.ge.s32.totalorder %s31, 2
    %s33 = scalar_select %p32, 0, %s31
    %s34 = ssub.s32 %s21, %s33
    %s35 = ssub.s32 %s22, %s29
    %s36 = sor.u32 %s34, %s35
    %p37 = scmp.eq.s32.totalorder %s36, 0
    %s39 = sadd.s32 %s38, 1
    %s40 = scalar_select %p37, %s38, %s39
    %p43 = pneg %p37
    %p44 = scmp.eq.s32.totalorder %s14, 1
    %p45 = por %p43, %p44
    %p46 = scmp.ne.s32.totalorder %s38, %s41
    %p47 = scmp.eq.s32.totalorder %s14, 0
    %p48 = por %p46, %p47
    %p49 = scmp.ne.s32.totalorder %s38, %s41
    %p50 = scmp.eq.s32.totalorder %s19, 1
    %p51 = por %p49, %p50
    %p52 = scmp.ne.s32.totalorder %s41, %s42
    %p53 = scmp.eq.s32.totalorder %s19, 0
    %p54 = por %p52, %p53
    %p55 = scmp.ne.s32.totalorder %s41, %s42
    %p56 = scmp.eq.s32.totalorder %s20, 1
    %p57 = por %p55, %p56
    %p59 = scmp.ne.s32.totalorder %s42, %s58
    %p60 = scmp.eq.s32.totalorder %s20, 0
    %p61 = por %p59, %p60
    %s62 = ssub.s32 %s21, %s33
    %s63 = ssub.s32 %s22, %s29
    %s64 = sor.u32 %s62, %s63
    %p65 = scmp.eq.s32.totalorder %s64, 0
    %s67 = sadd.s32 %s66, 1
    %s68 = scalar_select %p65, %s66, %s67
    %p71 = pneg %p65
    %p72 = scmp.eq.s32.totalorder %s14, 1
    %p73 = por %p71, %p72
    %p74 = scmp.ne.s32.totalorder %s66, %s69
    %p75 = scmp.eq.s32.totalorder %s14, 0
    %p76 = por %p74, %p75
    %p77 = scmp.ne.s32.totalorder %s66, %s69
    %p78 = scmp.eq.s32.totalorder %s19, 1
    %p79 = por %p77, %p78
    %p80 = scmp.ne.s32.totalorder %s69, %s70
    %p81 = scmp.eq.s32.totalorder %s19, 0
    %p82 = por %p80, %p81
    %p83 = scmp.ne.s32.totalorder %s69, %s70
    %p84 = scmp.eq.s32.totalorder %s20, 1
    %p85 = por %p83, %p84
    %p87 = scmp.ne.s32.totalorder %s70, %s86
    %p88 = scmp.eq.s32.totalorder %s20, 0
    %p89 = por %p87, %p88
    %s90 = ssub.s32 %s21, %s33
    %s91 = ssub.s32 %s22, %s29
    %s92 = sor.u32 %s90, %s91
    %p93 = scmp.eq.s32.totalorder %s92, 0
    %s95 = sadd.s32 %s94, 1
    %s96 = scalar_select %p93, %s94, %s95
    %p99 = pneg %p93
    %p100 = scmp.eq.s32.totalorder %s14, 1
    %p101 = por %p99, %p100
    %p102 = scmp.ne.s32.totalorder %s94, %s97
    %p103 = scmp.eq.s32.totalorder %s14, 0
    %p104 = por %p102, %p103
    %p105 = scmp.ne.s32.totalorder %s94, %s97
    %p106 = scmp.eq.s32.totalorder %s19, 1
    %p107 = por %p105, %p106
    %p108 = scmp.ne.s32.totalorder %s97, %s98
    %p109 = scmp.eq.s32.totalorder %s19, 0
    %p110 = por %p108, %p109
    %p111 = scmp.ne.s32.totalorder %s97, %s98
    %p112 = scmp.eq.s32.totalorder %s20, 1
    %p113 = por %p111, %p112
    %p115 = scmp.ne.s32.totalorder %s98, %s114
    %p116 = scmp.eq.s32.totalorder %s20, 0
    %p117 = por %p115, %p116
    %s119 = sadd.s32 %s118, 1
    %p122 = scmp.eq.s32.totalorder %s14, 1
    %p123 = scmp.ne.s32.totalorder %s118, %s120
    %p124 = scmp.eq.s32.totalorder %s14, 0
    %p125 = por %p123, %p124
    %p126 = scmp.ne.s32.totalorder %s118, %s120
    %p127 = scmp.eq.s32.totalorder %s19, 1
    %p128 = por %p126, %p127
    %p129 = scmp.ne.s32.totalorder %s120, %s121
    %p130 = scmp.eq.s32.totalorder %s19, 0
    %p131 = por %p129, %p130
    %p132 = scmp.ne.s32.totalorder %s120, %s121
    %p133 = scmp.eq.s32.totalorder %s20, 1
    %p134 = por %p132, %p133
    %p136 = scmp.ne.s32.totalorder %s121, %s135
    %p137 = scmp.eq.s32.totalorder %s20, 0
    %p138 = por %p136, %p137
    %s140 = sadd.s32 %s139, 1
    %p143 = scmp.eq.s32.totalorder %s14, 1
    %p144 = scmp.ne.s32.totalorder %s139, %s141
    %p145 = scmp.eq.s32.totalorder %s14, 0
    %p146 = por %p144, %p145
    %p147 = scmp.ne.s32.totalorder %s139, %s141
    %p148 = scmp.eq.s32.totalorder %s19, 1
    %p149 = por %p147, %p148
    %p150 = scmp.ne.s32.totalorder %s141, %s142
    %p151 = scmp.eq.s32.totalorder %s19, 0
    %p152 = por %p150, %p151
    %p153 = scmp.ne.s32.totalorder %s141, %s142
    %p154 = scmp.eq.s32.totalorder %s20, 1
    %p155 = por %p153, %p154
    %p157 = scmp.ne.s32.totalorder %s142, %s156
    %p158 = scmp.eq.s32.totalorder %s20, 0
    %p159 = por %p157, %p158
    %s161 = sadd.s32 %s160, 1
    %p164 = scmp.eq.s32.totalorder %s14, 1
    %p165 = scmp.ne.s32.totalorder %s160, %s162
    %p166 = scmp.eq.s32.totalorder %s14, 0
    %p167 = por %p165, %p166
    %p168 = scmp.ne.s32.totalorder %s160, %s162
    %p169 = scmp.eq.s32.totalorder %s19, 1
    %p170 = por %p168, %p169
    %p171 = scmp.ne.s32.totalorder %s162, %s163
    %p172 = scmp.eq.s32.totalorder %s19, 0
    %p173 = por %p171, %p172
    %p174 = scmp.ne.s32.totalorder %s162, %s163
    %p175 = scmp.eq.s32.totalorder %s20, 1
    %p176 = por %p174, %p175
    %p178 = scmp.ne.s32.totalorder %s163, %s177
    %p179 = scmp.eq.s32.totalorder %s20, 0
    %p180 = por %p178, %p179
    %s182 = sadd.s32 %s181, 1
    %p185 = scmp.eq.s32.totalorder %s14, 1
    %p186 = scmp.ne.s32.totalorder %s181, %s183
    %p187 = scmp.eq.s32.totalorder %s14, 0
    %p188 = por %p186, %p187
    %p189 = scmp.ne.s32.totalorder %s181, %s183
    %p190 = scmp.eq.s32.totalorder %s19, 1
    %p191 = por %p189, %p190
    %p192 = scmp.ne.s32.totalorder %s183, %s184
    %p193 = scmp.eq.s32.totalorder %s19, 0
    %p194 = por %p192, %p193
    %p195 = scmp.ne.s32.totalorder %s183, %s184
    %p196 = scmp.eq.s32.totalorder %s20, 1
    %p197 = por %p195, %p196
    %p199 = scmp.ne.s32.totalorder %s184, %s198
    %p200 = scmp.eq.s32.totalorder %s20, 0
    %p201 = por %p199, %p200
    %s203 = sadd.s32 %s202, 1
    %p206 = scmp.eq.s32.totalorder %s14, 1
    %p207 = scmp.ne.s32.totalorder %s202, %s204
    %p208 = scmp.eq.s32.totalorder %s14, 0
    %p209 = por %p207, %p208
    %p210 = scmp.ne.s32.totalorder %s202, %s204
    %p211 = scmp.eq.s32.totalorder %s19, 1
    %p212 = por %p210, %p211
    %p213 = scmp.ne.s32.totalorder %s204, %s205
    %p214 = scmp.eq.s32.totalorder %s19, 0
    %p215 = por %p213, %p214
    %p216 = scmp.ne.s32.totalorder %s204, %s205
    %p217 = scmp.eq.s32.totalorder %s20, 1
    %p218 = por %p216, %p217
    %p220 = scmp.ne.s32.totalorder %s205, %s219
    %p221 = scmp.eq.s32.totalorder %s20, 0
    %p222 = por %p220, %p221
    %s223 = ssub.s32 %s21, %s33
    %s224 = ssub.s32 %s22, %s29
    %s225 = sor.u32 %s223, %s224
    %p226 = scmp.eq.s32.totalorder %s225, 0
    %s228 = sadd.s32 %s227, 1
    %s229 = scalar_select %p226, %s227, %s228
    %p232 = pneg %p226
    %p233 = scmp.eq.s32.totalorder %s14, 1
    %p234 = por %p232, %p233
    %p235 = scmp.ne.s32.totalorder %s227, %s230
    %p236 = scmp.eq.s32.totalorder %s14, 0
    %p237 = por %p235, %p236
    %p238 = scmp.ne.s32.totalorder %s227, %s230
    %p239 = scmp.eq.s32.totalorder %s19, 1
    %p240 = por %p238, %p239
    %p241 = scmp.ne.s32.totalorder %s230, %s231
    %p242 = scmp.eq.s32.totalorder %s19, 0
    %p243 = por %p241, %p242
    %p244 = scmp.ne.s32.totalorder %s230, %s231
    %p245 = scmp.eq.s32.totalorder %s20, 1
    %p246 = por %p244, %p245
    %p248 = scmp.ne.s32.totalorder %s231, %s247
    %p249 = scmp.eq.s32.totalorder %s20, 0
    %p250 = por %p248, %p249
    %p251 = scmp.le.s32.totalorder 1, %s14
    %p252 = scmp.lt.s32.totalorder %s14, 3
    %p253 = pnand %p251, %p252
    %p254 = pneg %p253
    // Predicated region
    $region9: #{tpu_custom_call.1} parent=5 // pred_check
      _
    $region10: #{tpu_custom_call.1} parent=5 // pred_check_branch
      %256 = sbr.rel (%p253) target = $region12
    $region11: #{tpu_custom_call.1} parent=5 // pred_region
      %s257 = ssub.s32 %s14, 1
      // Predicated region
      $region13: #{tpu_custom_call.1} parent=11 // pred_check
        %p258 = pneg %p131
      $region14: #{tpu_custom_call.1} parent=11 // pred_check_branch
        %260 = sbr.rel (%p258) target = $region16
      $region15: #{tpu_custom_call.1} parent=11 // pred_region
        _
      $region16: #{tpu_custom_call.1} parent=11 // pred_fallthru
        _
      // Predicated region
      $region17: #{tpu_custom_call.1} parent=11 // pred_check
        %p261 = pneg %p152
      $region18: #{tpu_custom_call.1} parent=11 // pred_check_branch
        %263 = sbr.rel (%p261) target = $region20
      $region19: #{tpu_custom_call.1} parent=11 // pred_region
        _
      $region20: #{tpu_custom_call.1} parent=11 // pred_fallthru
        _
      // Predicated region
      $region21: #{tpu_custom_call.1} parent=11 // pred_check
        %p264 = pneg %p173
      $region22: #{tpu_custom_call.1} parent=11 // pred_check_branch
        %266 = sbr.rel (%p264) target = $region24
      $region23: #{tpu_custom_call.1} parent=11 // pred_region
        _
      $region24: #{tpu_custom_call.1} parent=11 // pred_fallthru
        _
      // Predicated region
      $region25: #{tpu_custom_call.1} parent=11 // pred_check
        %p267 = pneg %p194
      $region26: #{tpu_custom_call.1} parent=11 // pred_check_branch
        %269 = sbr.rel (%p267) target = $region28
      $region27: #{tpu_custom_call.1} parent=11 // pred_region
        _
      $region28: #{tpu_custom_call.1} parent=11 // pred_fallthru
        _
      // Predicated region
      $region29: #{tpu_custom_call.1} parent=11 // pred_check
        %p270 = pneg %p215
      $region30: #{tpu_custom_call.1} parent=11 // pred_check_branch
        %272 = sbr.rel (%p270) target = $region32
      $region31: #{tpu_custom_call.1} parent=11 // pred_region
        _
      $region32: #{tpu_custom_call.1} parent=11 // pred_fallthru
        _
    $region12: #{tpu_custom_call.1} parent=5 // pred_fallthru
      _
    %p273 = scmp.lt.s32.totalorder %s14, 2
    // Predicated region
    $region33: #{tpu_custom_call.1} parent=5 // pred_check
      %p274 = pneg %p273
    $region34: #{tpu_custom_call.1} parent=5 // pred_check_branch
      %276 = sbr.rel (%p274) target = $region36
    $region35: #{tpu_custom_call.1} parent=5 // pred_region
      // Predicated region
      $region37: #{tpu_custom_call.1} parent=35 // pred_check
        %p277 = pneg %p48
      $region38: #{tpu_custom_call.1} parent=35 // pred_check_branch
        %279 = sbr.rel (%p277) target = $region40
      $region39: #{tpu_custom_call.1} parent=35 // pred_region
        %s280 = smul.u32 2, %s22
        %p281 = scmp.lt.s32.totalorder %s21, 1
        %s282 = scalar_select %p281, %s21, 1
        %p283 = scmp.lt.s32.totalorder %s280, 1
        %s284 = scalar_select %p283, %s280, 1
        %s285 = smul.addr %s282, 2
        %s286 = sadd.s32 %s284, %s285
        %s287 = smul.addr %s286, 4
        %s288 = scalar_lea.vmem %s0, %s287
        %s289 = smul.u32 2, %s22
      $region40: #{tpu_custom_call.1} parent=35 // pred_fallthru
        _
      // Predicated region
      $region41: #{tpu_custom_call.1} parent=35 // pred_check
        %p290 = pneg %p76
      $region42: #{tpu_custom_call.1} parent=35 // pred_check_branch
        %292 = sbr.rel (%p290) target = $region44
      $region43: #{tpu_custom_call.1} parent=35 // pred_region
        %s293 = smul.u32 2, %s22
        %p294 = scmp.lt.s32.totalorder %s21, 1
        %s295 = scalar_select %p294, %s21, 1
        %p296 = scmp.lt.s32.totalorder %s293, 1
        %s297 = scalar_select %p296, %s293, 1
        %s298 = smul.addr %s295, 2
        %s299 = sadd.s32 %s297, %s298
        %s300 = smul.addr %s299, 4
        %s301 = scalar_lea.vmem %s1, %s300
        %s302 = smul.u32 2, %s22
      $region44: #{tpu_custom_call.1} parent=35 // pred_fallthru
        _
      // Predicated region
      $region45: #{tpu_custom_call.1} parent=35 // pred_check
        %p303 = pneg %p104
      $region46: #{tpu_custom_call.1} parent=35 // pred_check_branch
        %305 = sbr.rel (%p303) target = $region48
      $region47: #{tpu_custom_call.1} parent=35 // pred_region
        %s306 = smul.u32 2, %s22
        %p307 = scmp.lt.s32.totalorder %s21, 1
        %s308 = scalar_select %p307, %s21, 1
        %p309 = scmp.lt.s32.totalorder %s306, 1
        %s310 = scalar_select %p309, %s306, 1
        %s311 = smul.addr %s308, 2
        %s312 = sadd.s32 %s310, %s311
        %s313 = smul.addr %s312, 4
        %s314 = scalar_lea.vmem %s2, %s313
        %s315 = smul.u32 2, %s22
      $region48: #{tpu_custom_call.1} parent=35 // pred_fallthru
        _
    $region36: #{tpu_custom_call.1} parent=5 // pred_fallthru
      _
    %p316 = scmp.le.s32.totalorder 1, %s14
    %p317 = scmp.lt.s32.totalorder %s14, 3
    %p318 = pnand %p316, %p317
    %p319 = pneg %p318
    // Predicated region
    $region49: #{tpu_custom_call.1} parent=5 // pred_check
      _
    $region50: #{tpu_custom_call.1} parent=5 // pred_check_branch
      %321 = sbr.rel (%p318) target = $region52
    $region51: #{tpu_custom_call.1} parent=5 // pred_region
      %s322 = ssub.s32 %s14, 1
      %s323 = smul.u32 2, %s24
      %p324 = scmp.lt.s32.totalorder %s23, 1
      %s325 = scalar_select %p324, %s23, 1
      %p326 = scmp.lt.s32.totalorder %s323, 1
      %s327 = scalar_select %p326, %s323, 1
      %s328 = smul.addr %s325, 2
      %s329 = sadd.s32 %s327, %s328
      %s330 = smul.addr %s329, 4
      %s331 = scalar_lea.vmem %s0, %s330
      %p332 = pneg %p54
      %p333 = pneg %p51
      %s334 = smul.u32 2, %s24
      %p335 = scmp.lt.s32.totalorder %s23, 1
      %s336 = scalar_select %p335, %s23, 1
      %p337 = scmp.lt.s32.totalorder %s334, 1
      %s338 = scalar_select %p337, %s334, 1
      %s339 = smul.addr %s336, 2
      %s340 = sadd.s32 %s338, %s339
      %s341 = smul.addr %s340, 4
      %s342 = scalar_lea.vmem %s1, %s341
      %p343 = pneg %p82
      %p344 = pneg %p79
      %s345 = smul.u32 2, %s24
      %p346 = scmp.lt.s32.totalorder %s23, 1
      %s347 = scalar_select %p346, %s23, 1
      %p348 = scmp.lt.s32.totalorder %s345, 1
      %s349 = scalar_select %p348, %s345, 1
      %s350 = smul.addr %s347, 2
      %s351 = sadd.s32 %s349, %s350
      %s352 = smul.addr %s351, 4
      %s353 = scalar_lea.vmem %s2, %s352
      %p354 = pneg %p110
      %p355 = pneg %p107
      %p356 = pneg %p131
      %p357 = pneg %p128
      %p358 = pneg %p152
      %p359 = pneg %p149
      %p360 = pneg %p173
      %p361 = pneg %p170
      %p362 = pneg %p194
      %p363 = pneg %p191
      %p364 = pneg %p215
      %p365 = pneg %p212
      %p366 = pneg %p243
      %p367 = pneg %p240
      %s368 = smul.u32 2, %s24
      %p369 = scmp.lt.s32.totalorder %s23, 1
      %s370 = scalar_select %p369, %s23, 1
      %p371 = scmp.lt.s32.totalorder %s368, 1
      %s372 = scalar_select %p371, %s368, 1
      %s373 = smul.addr %s370, 4
      %s374 = sadd.s32 %s372, %s373
      %s375 = smul.addr %s374, 8
      %s376 = scalar_lea.vmem %s8, %s375
      %s377 = smul.u32 2, %s24
      %p378 = scmp.lt.s32.totalorder %s23, 1
      %s379 = scalar_select %p378, %s23, 1
      %p380 = scmp.lt.s32.totalorder %s377, 1
      %s381 = scalar_select %p380, %s377, 1
      %s382 = smul.addr %s379, 2
      %s383 = sadd.s32 %s381, %s382
      %s384 = smul.addr %s383, 4
      %s385 = scalar_lea.vmem %s0, %s384
      %s386 = smul.u32 2, %s24
      %s387 = smul.u32 2, %s24
      %p388 = scmp.lt.s32.totalorder %s23, 1
      %s389 = scalar_select %p388, %s23, 1
      %p390 = scmp.lt.s32.totalorder %s387, 1
      %s391 = scalar_select %p390, %s387, 1
      %s392 = smul.addr %s389, 2
      %s393 = sadd.s32 %s391, %s392
      %s394 = smul.addr %s393, 4
      %s395 = scalar_lea.vmem %s1, %s394
      %s396 = smul.u32 2, %s24
      %s397 = smul.u32 2, %s24
      %p398 = scmp.lt.s32.totalorder %s23, 1
      %s399 = scalar_select %p398, %s23, 1
      %p400 = scmp.lt.s32.totalorder %s397, 1
      %s401 = scalar_select %p400, %s397, 1
      %s402 = smul.addr %s399, 2
      %s403 = sadd.s32 %s401, %s402
      %s404 = smul.addr %s403, 4
      %s405 = scalar_lea.vmem %s2, %s404
      %s406 = smul.u32 2, %s24
      %s407 = smul.u32 2, %s24
      %p408 = scmp.lt.s32.totalorder %s23, 1
      %s409 = scalar_select %p408, %s23, 1
      %p410 = scmp.lt.s32.totalorder %s407, 1
      %s411 = scalar_select %p410, %s407, 1
      %s412 = smul.addr %s409, 4
      %s413 = sadd.s32 %s411, %s412
      %s414 = smul.addr %s413, 8
      %s415 = scalar_lea.vmem %s8, %s414
      %s416 = smul.u32 2, %s24
      %v418 = vld [vmem:[%s3] sm:$0xf]
      %v419 = vld [vmem:[%s3 + $0x4] sm:$0xf]
      %v420 = vld [vmem:[%s3 + $0x8] sm:$0xf]
      %v421 = vld [vmem:[%s3 + $0xc] sm:$0xf]
      %v422 = vld [vmem:[%s4] sm:$0xff]
      %v423 = vld [vmem:[%s4 + $0x8] sm:$0xff]
      %v424 = vld [vmem:[%s4 + $0x10] sm:$0xff]
      %v425 = vld [vmem:[%s4 + $0x18] sm:$0xff]
      %v426 = vld [vmem:[%s5] sm:$0xf]
      %v427 = vld [vmem:[%s5 + $0x4] sm:$0x1]
      %v428 = vld [vmem:[%s6] sm:$0xff]
      %v429 = vld [vmem:[%s6 + $0x8] sm:$0x3]
      %v430 = vld [vmem:[%s7] sm:$0xff]
      %v431 = vld [vmem:[%s7 + $0x8] sm:$0x3]
      %v432 = vld [vmem:[%s385] sm:$0xff]
      %434 = vst [vmem:[#allocation1] ss:$2 sm:$0xff] %v432
      %v435 = vld.sshfl [vmem:[#allocation1] sm:$0xff pattern:$0x75316420]
      %v436 = vld.sshfl [vmem:[#allocation1 + $0x8] sm:$0xff pattern:$0x75316420]
      %439 = vst [vmem:[#allocation2] sm:$0xf] %v435
      %440 = vst [vmem:[#allocation2 + $0x8] sm:$0xf] %v436
      %v441 = vld [vmem:[%s395] sm:$0x77]
      %s443 = scalar_lea.vmem [#allocation1], 1
      %444 = vst [vmem:[%s443] ss:$2 sm:$0xff] %v441
      %v445 = vld.sshfl [vmem:[#allocation1] sm:$0xff pattern:$0x75316420]
      %v446 = vld.sshfl [vmem:[#allocation1 + $0x8] sm:$0xff pattern:$0x75316420]
      %449 = vst [vmem:[#allocation2] sm:$0x70] %v445
      %450 = vst [vmem:[#allocation2 + $0x8] sm:$0x70] %v446
      %v451 = vld [vmem:[%s405] sm:$0x77]
      %453 = vst [vmem:[#allocation1] ss:$2 sm:$0xff] %v451
      %v454 = vld.sshfl [vmem:[#allocation1] sm:$0xff pattern:$0x75316420]
      %v455 = vld.sshfl [vmem:[#allocation1 + $0x8] sm:$0xff pattern:$0x75316420]
      %v456 = vrot.slane %v454, 1
      %v457 = vrot.slane %v455, 1
      %460 = vst [vmem:[#allocation2] sm:$0x80] %v456
      %461 = vst [vmem:[#allocation2 + $0x8] sm:$0x80] %v457
      %462 = vst [vmem:[#allocation2 + $0x10] sm:$0x3] %v456
      %463 = vst [vmem:[#allocation2 + $0x18] sm:$0x3] %v457
      %v464 = vld [vmem:[#allocation2] sm:$0xff]
      %v465 = vld [vmem:[#allocation2 + $0x8] sm:$0xff]
      %v466 = vld [vmem:[#allocation2 + $0x10] sm:$0x3]
      %v467 = vld [vmem:[#allocation2 + $0x18] sm:$0x3]
      %v468 = vpack.c.bf16 %v466, %v464
      %v469 = vpack.c.bf16 %v467, %v465
      %471 = vset.pattern.permute.xlu0 0
      %472 = vperm.xlu0 %471, %v422
      %v473 = vpop.permute.xlu0 %472
      %476 = vset.pattern.permute.xlu0 0
      %477 = vperm.xlu0 %476, %v423
      %v478 = vpop.permute.xlu0 %477
      %481 = vset.pattern.permute.xlu0 0
      %482 = vperm.xlu0 %481, %v424
      %v483 = vpop.permute.xlu0 %482
      %486 = vset.pattern.permute.xlu0 0
      %487 = vperm.xlu0 %486, %v425
      %v488 = vpop.permute.xlu0 %487
      %v494 = vunpack.c.l.b16 %v418
      %v495 = vunpack.c.l.b16 %v419
      %v496 = vunpack.c.l.b16 %v420
      %v497 = vunpack.c.l.b16 %v421
      %v498 = vpack.c.b16 %v495, %v494
      %v499 = vpack.c.b16 %v497, %v496
      %vm500 = vcmask 80896
      %v502 = vsel %vm500, %v498, 0
      %v505 = vsel %vm500, %v499, 0
      %vm507 = vcmask 1044480
      %v509 = vsel %vm507, %v468, 0
      %v512 = vsel %vm507, %v469, 0
      %514 = vmatpush.bf16.msra.mxu0 0
      %515 = vmatpush.bf16.msra.mxu0 0
      %516 = vmatpush.bf16.msra.mxu0 0
      %517 = vmatpush.bf16.msra.mxu0 0
      %518 = vmatpush.bf16.msra.mxu0 0
      %519 = vmatpush.bf16.msra.mxu0 0
      %520 = vmatpush.bf16.msra.mxu0 0
      %521 = vmatpush.bf16.msra.mxu0 %v509
      %522 = vmatmul.bf16.gmra.mxu0 %v502
      %v523 = vpop.f32.mrf.mxu0
      %v524 = vadd.f32 %v473, %v523
      %v525 = vpop.f32.mrf.mxu0
      %v526 = vadd.f32 %v478, %v525
      %527 = vmatmul.bf16.gmra.mxu0 %v505
      %v528 = vpop.f32.mrf.mxu0
      %v529 = vadd.f32 %v483, %v528
      %v530 = vpop.f32.mrf.mxu0
      %v531 = vadd.f32 %v488, %v530
      %532 = vdwg.mxu0
      %533 = vmatpush.bf16.msra.mxu0 0
      %534 = vmatpush.bf16.msra.mxu0 0
      %535 = vmatpush.bf16.msra.mxu0 0
      %536 = vmatpush.bf16.msra.mxu0 0
      %537 = vmatpush.bf16.msra.mxu0 0
      %538 = vmatpush.bf16.msra.mxu0 0
      %539 = vmatpush.bf16.msra.mxu0 0
      %540 = vmatpush.bf16.msra.mxu0 %v512
      %541 = vmatmul.bf16.gmra.mxu0 %v502
      %v542 = vpop.f32.mrf.mxu0
      %v543 = vadd.f32 %v473, %v542
      %v544 = vpop.f32.mrf.mxu0
      %v545 = vadd.f32 %v478, %v544
      %546 = vmatmul.bf16.gmra.mxu0 %v505
      %v547 = vpop.f32.mrf.mxu0
      %v548 = vadd.f32 %v483, %v547
      %v549 = vpop.f32.mrf.mxu0
      %v550 = vadd.f32 %v488, %v549
      %551 = vdwg.mxu0
      %v552 = vmax.f32 %v524, 0.0
      %v553 = vmax.f32 %v543, 0.0
      %v554 = vmax.f32 %v526, 0.0
      %v555 = vmax.f32 %v545, 0.0
      %v556 = vmax.f32 %v529, 0.0
      %v557 = vmax.f32 %v548, 0.0
      %v558 = vmax.f32 %v531, 0.0
      %v559 = vmax.f32 %v550, 0.0
      %v560 = vpack.c.bf16 %v554, %v552
      %v561 = vpack.c.bf16 %v555, %v553
      %v562 = vpack.c.bf16 %v558, %v556
      %v563 = vpack.c.bf16 %v559, %v557
      %565 = vset.pattern.permute.xlu0 0
      %566 = vperm.xlu0 %565, %v428
      %v567 = vpop.permute.xlu0 %566
      %570 = vset.pattern.permute.xlu0 0
      %571 = vperm.xlu0 %570, %v429
      %v572 = vpop.permute.xlu0 %571
      %v576 = vunpack.c.l.b16 %v426
      %v577 = vunpack.c.l.b16 %v427
      %v578 = vpack.c.b16 %v577, %v576
      %vm579 = vcmask 261120
      %v581 = vsel %vm579, %v578, 0
      %583 = vmatpush.bf16.msra.mxu0 0
      %584 = vmatpush.bf16.msra.mxu0 0
      %585 = vmatpush.bf16.msra.mxu0 0
      %586 = vmatpush.bf16.msra.mxu0 0
      %587 = vmatpush.bf16.msra.mxu0 0
      %588 = vmatpush.bf16.msra.mxu0 0
      %589 = vmatpush.bf16.msra.mxu0 %v562
      %590 = vmatpush.bf16.msra.mxu0 %v560
      %591 = vmatmul.bf16.gmra.mxu0 %v581
      %v592 = vpop.f32.mrf.mxu0
      %v593 = vadd.f32 %v567, %v592
      %v594 = vpop.f32.mrf.mxu0
      %v595 = vadd.f32 %v572, %v594
      %596 = vdwg.mxu0
      %597 = vmatpush.bf16.msra.mxu0 0
      %598 = vmatpush.bf16.msra.mxu0 0
      %599 = vmatpush.bf16.msra.mxu0 0
      %600 = vmatpush.bf16.msra.mxu0 0
      %601 = vmatpush.bf16.msra.mxu0 0
      %602 = vmatpush.bf16.msra.mxu0 0
      %603 = vmatpush.bf16.msra.mxu0 %v563
      %604 = vmatpush.bf16.msra.mxu0 %v561
      %605 = vmatmul.bf16.gmra.mxu0 %v581
      %v606 = vpop.f32.mrf.mxu0
      %v607 = vadd.f32 %v567, %v606
      %v608 = vpop.f32.mrf.mxu0
      %v609 = vadd.f32 %v572, %v608
      %610 = vdwg.mxu0
      %v611 = vxor.u32 %v593, 2147483648
      %v612 = vxor.u32 %v607, 2147483648
      %v613 = vxor.u32 %v595, 2147483648
      %v614 = vxor.u32 %v609, 2147483648
      %v615 = vmul.f32 %v611, 1.442695
      %v616 = vpow.pop %v615
      %v617 = vmul.f32 %v612, 1.442695
      %v618 = vpow.pop %v617
      %v619 = vmul.f32 %v613, 1.442695
      %v620 = vpow.pop %v619
      %v621 = vmul.f32 %v614, 1.442695
      %v622 = vpow.pop %v621
      %v623 = vadd.f32 %v616, 1.0
      %v624 = vadd.f32 %v618, 1.0
      %v625 = vadd.f32 %v620, 1.0
      %v626 = vadd.f32 %v622, 1.0
      %v627 = vrcp.pop %v623
      %v628 = vmul.f32 %v623, %v627
      %v629 = vsub.f32 1.0, %v628
      %v630 = vmul.f32 %v627, %v629
      %v631 = vadd.f32 %v627, %v630
      %vm632 = vweird.f32 %v623
      %vm633 = vweird.f32 %v627
      %vm634 = vmor %vm632, %vm633
      %v635 = vsel %vm634, %v627, %v631
      %v636 = vand.u32 2147483647, %v623
      %vm637 = vcmp.eq.f32.partialorder %v636, 8.507059e+37
      %v638 = vand.u32 %v623, 2147483648
      %v639 = vor.u32 1.1754944e-38, %v638
      %v640 = vsel %vm637, %v639, %v635
      %v641 = vmul.f32 1.0, %v640
      %v642 = vrcp.pop %v624
      %v643 = vmul.f32 %v624, %v642
      %v644 = vsub.f32 1.0, %v643
      %v645 = vmul.f32 %v642, %v644
      %v646 = vadd.f32 %v642, %v645
      %vm647 = vweird.f32 %v624
      %vm648 = vweird.f32 %v642
      %vm649 = vmor %vm647, %vm648
      %v650 = vsel %vm649, %v642, %v646
      %v651 = vand.u32 2147483647, %v624
      %vm652 = vcmp.eq.f32.partialorder %v651, 8.507059e+37
      %v653 = vand.u32 %v624, 2147483648
      %v654 = vor.u32 1.1754944e-38, %v653
      %v655 = vsel %vm652, %v654, %v650
      %v656 = vmul.f32 1.0, %v655
      %v657 = vrcp.pop %v625
      %v658 = vmul.f32 %v625, %v657
      %v659 = vsub.f32 1.0, %v658
      %v660 = vmul.f32 %v657, %v659
      %v661 = vadd.f32 %v657, %v660
      %vm662 = vweird.f32 %v625
      %vm663 = vweird.f32 %v657
      %vm664 = vmor %vm662, %vm663
      %v665 = vsel %vm664, %v657, %v661
      %v666 = vand.u32 2147483647, %v625
      %vm667 = vcmp.eq.f32.partialorder %v666, 8.507059e+37
      %v668 = vand.u32 %v625, 2147483648
      %v669 = vor.u32 1.1754944e-38, %v668
      %v670 = vsel %vm667, %v669, %v665
      %v671 = vmul.f32 1.0, %v670
      %v672 = vrcp.pop %v626
      %v673 = vmul.f32 %v626, %v672
      %v674 = vsub.f32 1.0, %v673
      %v675 = vmul.f32 %v672, %v674
      %v676 = vadd.f32 %v672, %v675
      %vm677 = vweird.f32 %v626
      %vm678 = vweird.f32 %v672
      %vm679 = vmor %vm677, %vm678
      %v680 = vsel %vm679, %v672, %v676
      %v681 = vand.u32 2147483647, %v626
      %vm682 = vcmp.eq.f32.partialorder %v681, 8.507059e+37
      %v683 = vand.u32 %v626, 2147483648
      %v684 = vor.u32 1.1754944e-38, %v683
      %v685 = vsel %vm682, %v684, %v680
      %v686 = vmul.f32 1.0, %v685
      %v687 = vsub.f32 %v641, %v593
      %v688 = vsub.f32 %v656, %v607
      %v689 = vsub.f32 %v671, %v595
      %v690 = vsub.f32 %v686, %v609
      %692 = vset.pattern.permute.xlu0 0
      %693 = vperm.xlu0 %692, %v430
      %v694 = vpop.permute.xlu0 %693
      %697 = vset.pattern.permute.xlu0 0
      %698 = vperm.xlu0 %697, %v431
      %v699 = vpop.permute.xlu0 %698
      %v701 = vmul.f32 %v694, %v687
      %v702 = vmul.f32 %v694, %v688
      %v703 = vmul.f32 %v699, %v689
      %v704 = vmul.f32 %v699, %v690
      %v705 = vadd.f32 %v593, %v701
      %v706 = vadd.f32 %v607, %v702
      %v707 = vadd.f32 %v595, %v703
      %v708 = vadd.f32 %v609, %v704
      %709 = vst [vmem:[%s415] sm:$0xff] %v705
      %710 = vst [vmem:[%s415 + $0x8] sm:$0xff] %v706
      %711 = vst [vmem:[%s415 + $0x10] sm:$0x3] %v707
      %712 = vst [vmem:[%s415 + $0x18] sm:$0x3] %v708
      %s713 = smul.u32 2, %s24
      %p714 = scmp.lt.s32.totalorder %s23, 1
      %s715 = scalar_select %p714, %s23, 1
      %p716 = scmp.lt.s32.totalorder %s713, 1
      %s717 = scalar_select %p716, %s713, 1
      %s718 = smul.addr %s715, 4
      %s719 = sadd.s32 %s717, %s718
      %s720 = smul.addr %s719, 8
      %s721 = scalar_lea.vmem %s8, %s720
      // Predicated region
      $region53: #{tpu_custom_call.1} parent=51 // pred_check
        %p722 = pneg %p240
      $region54: #{tpu_custom_call.1} parent=51 // pred_check_branch
        %724 = sbr.rel (%p722) target = $region56
      $region55: #{tpu_custom_call.1} parent=51 // pred_region
        %s725 = smul.u32 2, %s24
      $region56: #{tpu_custom_call.1} parent=51 // pred_fallthru
        _
    $region52: #{tpu_custom_call.1} parent=5 // pred_fallthru
      _
    %p726 = scmp.le.s32.totalorder 2, %s14
    // Predicated region
    $region57: #{tpu_custom_call.1} parent=5 // pred_check
      %p727 = pneg %p726
    $region58: #{tpu_custom_call.1} parent=5 // pred_check_branch
      %729 = sbr.rel (%p727) target = $region60
    $region59: #{tpu_custom_call.1} parent=5 // pred_region
      %s730 = ssub.s32 %s14, 2
      // Predicated region
      $region61: #{tpu_custom_call.1} parent=59 // pred_check
        %p731 = pneg %p246
      $region62: #{tpu_custom_call.1} parent=59 // pred_check_branch
        %733 = sbr.rel (%p731) target = $region64
      $region63: #{tpu_custom_call.1} parent=59 // pred_region
        %s734 = smul.u32 2, %s26
        %p735 = scmp.lt.s32.totalorder %s25, 1
        %s736 = scalar_select %p735, %s25, 1
        %p737 = scmp.lt.s32.totalorder %s734, 1
        %s738 = scalar_select %p737, %s734, 1
        %s739 = smul.addr %s736, 4
        %s740 = sadd.s32 %s738, %s739
        %s741 = smul.addr %s740, 8
        %s742 = scalar_lea.vmem %s8, %s741
      $region64: #{tpu_custom_call.1} parent=59 // pred_fallthru
        _
    $region60: #{tpu_custom_call.1} parent=5 // pred_fallthru
      _
  $region6: #{tpu_custom_call.1} parent=0 // loop_footer
    %s18 = sadd.s32 1, %s14
  $region7: #{tpu_custom_call.1} parent=0 // loop_footer_branch
    %13 = sbr.rel target = $region3
  $region8: #{tpu_custom_call.1} parent=0 // loop_exit
    _

</llo_original>
